<compile_context>
chip_gen: v5e
topology: v5e:2x2
jax: 0.10.0
libtpu: 0.0.40
codegen_flags: <defaults>
</compile_context>

<pallas_src>
import functools

import jax
import jax.numpy as jnp
from jax import lax
from jax.experimental import pallas as pl
from jax.experimental.pallas import tpu as pltpu


def _coord_conv_kernel(x_ref, w_ref, b_ref, o_ref, *,
                       N, H, W, OH, KH, PAD, C, LOG2C, CIN, use_radius):
    # x_ref : (N, HP, W*C)        H-padded input slab; raw channels at c < CIN,
    #                             zeros elsewhere (coord channels filled here).
    # w_ref : (KH*W*C, OW*Cout)   banded weight (KW taps + W-padding folded in).
    # b_ref : (1, OW*Cout)        bias tiled over output columns.
    # o_ref : (N, OH, OW*Cout)    lane-dense output.
    WC = W * C
    HP = H + 2 * PAD

    xs = x_ref[...].astype(jnp.float32)                       # (N, HP, WC)

    # ---- coordinate channels: built once on (HP, WC), broadcast over N -----
    lane = lax.broadcasted_iota(jnp.int32, (HP, WC), 1)
    row = lax.broadcasted_iota(jnp.int32, (HP, WC), 0)
    c_idx = lane & (C - 1)                                     # channel within pixel
    w_idx = lane >> LOG2C                                      # pixel column
    interior = (row >= PAD) & (row < PAD + H)                  # conv zero-pad rows stay 0

    # NOTE: the original module divides by (length - 1) and yields NaN/inf for
    # H == 1 or W == 1; we guard the Python-side constant instead (behaviour
    # differs only in that degenerate case).
    xgrid = -1.0 + w_idx.astype(jnp.float32) * (2.0 / max(W - 1, 1))
    ygrid = -1.0 + (row - PAD).astype(jnp.float32) * (2.0 / max(H - 1, 1))

    coord = jnp.where(c_idx == CIN, xgrid,
                      jnp.where(c_idx == CIN + 1, ygrid, 0.0))
    if use_radius:
        rad = jnp.sqrt((xgrid - 0.5) ** 2 + (ygrid - 0.5) ** 2)
        coord = jnp.where(c_idx == CIN + 2, rad, coord)
    coord = jnp.where(interior, coord, 0.0)                    # (HP, WC)

    aug = xs + coord[None, :, :]                               # (N, HP, WC)

    # ---- KH accumulating K=WC dots against static 128-row weight bands -----
    rows = N * OH
    acc = jnp.dot(aug[:, 0:OH, :].reshape(rows, WC), w_ref[0:WC, :],
                  preferred_element_type=jnp.float32)
    for r in range(1, KH):                                     # static unroll (KH=3)
        acc = acc + jnp.dot(aug[:, r:r + OH, :].reshape(rows, WC),
                            w_ref[r * WC:(r + 1) * WC, :],
                            preferred_element_type=jnp.float32)

    acc = acc + b_ref[...]                                     # broadcast over rows
    o_ref[...] = acc.reshape(N, OH, o_ref.shape[-1]).astype(o_ref.dtype)


def add_coords(x_nchw, use_radius=False):
    """Pure-JAX replica of _AddCoords (used only by the self-check)."""
    n, _, h, w = x_nchw.shape
    dt = x_nchw.dtype
    xs = -1.0 + jnp.arange(w, dtype=dt) / (w - 1) * 2.0
    ys = -1.0 + jnp.arange(h, dtype=dt) / (h - 1) * 2.0
    x_coords = jnp.broadcast_to(xs.reshape(1, 1, 1, w), (n, 1, h, w))
    y_coords = jnp.broadcast_to(ys.reshape(1, 1, h, 1), (n, 1, h, w))
    feats = [x_nchw, x_coords, y_coords]
    if use_radius:
        feats.append(jnp.sqrt((x_coords - 0.5) ** 2 + (y_coords - 0.5) ** 2))
    return jnp.concatenate(feats, axis=1)


def _coord_conv2d_impl(x_nchw, weight, bias, *, padding=1, use_radius=False):
    """weight: (Cout, Cin+extra, KH, KW) OIHW; bias: (Cout,). Returns NCHW."""
    n, cin, h, w = x_nchw.shape
    cout, cin_aug, kh_sz, kw_sz = weight.shape
    extra = 3 if use_radius else 2
    assert cin_aug == cin + extra, (cin_aug, cin, extra)

    cpad = 1 << (cin_aug - 1).bit_length()     # power of two -> shift/and in kernel
    log2c = cpad.bit_length() - 1
    hp = h + 2 * padding
    oh = hp - kh_sz + 1                         # stride-1 conv
    ow = w + 2 * padding - kw_sz + 1

    # ---- input: NCHW -> lane-dense (N, Hp, W*Cpad) slab (raw channels only;
    # coordinate channels are generated inside the kernel).
    x_nhwc = jnp.transpose(x_nchw, (0, 2, 3, 1))
    x_slab = jnp.pad(x_nhwc,
                     ((0, 0), (padding, padding), (0, 0), (0, cpad - cin)))
    x_slab = x_slab.reshape(n, hp, w * cpad)

    # ---- weight: OIHW -> banded (KH*W*Cpad, OW*Cout) matrix.
    # Row (kh, p, c) / column (j, o) holds w[o, c, kh, p - j + padding] when the
    # tap index is in range, else 0 -- this folds both the KW taps and the
    # W-direction zero padding into the matmul operand.
    w_hwio = jnp.transpose(weight, (2, 3, 1, 0))               # (KH, KW, Cin_aug, Cout)
    w_hwio = jnp.pad(w_hwio, ((0, 0), (0, 0), (0, cpad - cin_aug), (0, 0)))
    p_col = jnp.arange(w)[:, None]                             # input column
    j_col = jnp.arange(ow)[None, :]                            # output column
    kw_idx = p_col - j_col + padding                           # (W, OW)
    valid = (kw_idx >= 0) & (kw_idx < kw_sz)
    wk = w_hwio[:, jnp.clip(kw_idx, 0, kw_sz - 1)]             # (KH, W, OW, Cpad, Cout)
    wk = jnp.where(valid[None, :, :, None, None], wk, 0.0)
    w_mat = jnp.transpose(wk, (0, 1, 3, 2, 4)).reshape(kh_sz * w * cpad, ow * cout)

    b_row = jnp.tile(bias, ow).reshape(1, ow * cout).astype(jnp.float32)

    kernel = functools.partial(
        _coord_conv_kernel, N=n, H=h, W=w, OH=oh, KH=kh_sz, PAD=padding,
        C=cpad, LOG2C=log2c, CIN=cin, use_radius=use_radius)

    out_flat = pl.pallas_call(
        kernel,
        out_shape=jax.ShapeDtypeStruct((n, oh, ow * cout), x_nchw.dtype),
        grid_spec=pltpu.PrefetchScalarGridSpec(
            num_scalar_prefetch=0,
            grid=(1,),                                          # single fused step
            in_specs=[
                pl.BlockSpec((n, hp, w * cpad), lambda i: (0, 0, 0)),
                pl.BlockSpec((kh_sz * w * cpad, ow * cout), lambda i: (0, 0)),
                pl.BlockSpec((1, ow * cout), lambda i: (0, 0)),
            ],
            out_specs=pl.BlockSpec((n, oh, ow * cout), lambda i: (0, 0, 0)),
        ),
        compiler_params=pltpu.CompilerParams(
            dimension_semantics=("arbitrary",)),
    )(x_slab, w_mat, b_row)

    out_nhwc = out_flat.reshape(n, oh, ow, cout)
    return jnp.transpose(out_nhwc, (0, 3, 1, 2))                # back to NCHW


# Jitted entry point: fuses the weight-band construction, input layout change
# and output transpose; recompiles only per (shape, padding, use_radius).
coord_conv2d = jax.jit(_coord_conv2d_impl,
                       static_argnames=("padding", "use_radius"))


if __name__ == "__main__":
    # Module config: CoordConv2D(in_channels=4, out_channels=8, kernel_size=3,
    #                            padding=1, use_radius=False / True)
    N, CIN, H, W = 2, 4, 16, 16
    COUT, K, PAD = 8, 3, 1

    key = jax.random.PRNGKey(0)
    kx, kw1, kb1, kw2, kb2 = jax.random.split(key, 5)
    x = jax.random.normal(kx, (N, CIN, H, W), dtype=jnp.float32)

    for use_radius, kw_key, kb_key in ((False, kw1, kb1), (True, kw2, kb2)):
        cin_aug = CIN + (3 if use_radius else 2)
        fan_in = cin_aug * K * K
        bound = 1.0 / (fan_in ** 0.5)
        weight = jax.random.uniform(kw_key, (COUT, cin_aug, K, K),
                                    minval=-bound, maxval=bound,
                                    dtype=jnp.float32)
        bias = jax.random.uniform(kb_key, (COUT,),
                                  minval=-bound, maxval=bound,
                                  dtype=jnp.float32)

        out = coord_conv2d(x, weight, bias, padding=PAD, use_radius=use_radius)
        out = jax.block_until_ready(out)
        assert out.shape == (N, COUT, H, W), out.shape

        # Self-check against XLA's conv on the coordinate-augmented input.
        f_ref = add_coords(x, use_radius=use_radius)
        ref = lax.conv_general_dilated(
            f_ref, weight, window_strides=(1, 1),
            padding=((PAD, PAD), (PAD, PAD)),
            dimension_numbers=("NCHW", "OIHW", "NCHW"),
        ) + bias.reshape(1, COUT, 1, 1)
        ref = jax.block_until_ready(ref)

        if not jnp.allclose(out, ref, rtol=1e-4, atol=1e-4):
            raise AssertionError(
                f"Pallas CoordConv2D mismatch (use_radius={use_radius})")

    print("KERNEL_OK")
</pallas_src>

<mosaic_0001>
module attributes {stable_mosaic.version = 11 : i64} {
  func.func @_coord_conv_kernel(%arg0: i32, %arg1: memref<2x18x128xf32, #tpu.memory_space<vmem>>, %arg2: memref<384x128xf32, #tpu.memory_space<vmem>>, %arg3: memref<1x128xf32, #tpu.memory_space<vmem>>, %arg4: memref<2x16x128xf32, #tpu.memory_space<vmem>>) attributes {dimension_semantics = [#tpu.dimension_semantics<arbitrary>], iteration_bounds = array<i64: 1>, scalar_prefetch = 0 : i64, scratch_operands = 0 : i64, tpu.core_type = #tpu.core_type<tc>, window_params = [{pipeline_mode = #tpu.pipeline_mode<synchronous>, transform_indices = @transform_0, window_bounds = array<i64: 2, 18, 128>}, {pipeline_mode = #tpu.pipeline_mode<synchronous>, transform_indices = @transform_1, window_bounds = array<i64: 384, 128>}, {pipeline_mode = #tpu.pipeline_mode<synchronous>, transform_indices = @transform_2, window_bounds = array<i64: 1, 128>}, {pipeline_mode = #tpu.pipeline_mode<synchronous>, transform_indices = @transform_3, window_bounds = array<i64: 2, 16, 128>}]} {
    %c0 = arith.constant 0 : index
    %c0_0 = arith.constant 0 : index
    %c0_1 = arith.constant 0 : index
    %0 = vector.load %arg1[%c0, %c0_0, %c0_1] : memref<2x18x128xf32, #tpu.memory_space<vmem>>, vector<2x18x128xf32>
    %1 = tpu.iota {dimensions = array<i32: 1>} : vector<18x128xi32>
    %2 = tpu.iota {dimensions = array<i32: 0>} : vector<18x128xi32>
    %c7_i32 = arith.constant 7 : i32
    %3 = vector.broadcast %c7_i32 : i32 to vector<18x128xi32>
    %4 = arith.andi %1, %3 : vector<18x128xi32>
    %c3_i32 = arith.constant 3 : i32
    %5 = vector.broadcast %c3_i32 : i32 to vector<18x128xi32>
    %6 = arith.shrsi %1, %5 : vector<18x128xi32>
    %c1_i32 = arith.constant 1 : i32
    %7 = vector.broadcast %c1_i32 : i32 to vector<18x128xi32>
    %8 = arith.cmpi sge, %2, %7 : vector<18x128xi32>
    %c17_i32 = arith.constant 17 : i32
    %9 = vector.broadcast %c17_i32 : i32 to vector<18x128xi32>
    %10 = arith.cmpi slt, %2, %9 : vector<18x128xi32>
    %11 = arith.andi %8, %10 : vector<18x128xi1>
    %12 = arith.sitofp %6 : vector<18x128xi32> to vector<18x128xf32>
    %cst = arith.constant 0.13333334 : f32
    %13 = vector.broadcast %cst : f32 to vector<18x128xf32>
    %14 = arith.mulf %12, %13 : vector<18x128xf32>
    %cst_2 = arith.constant -1.000000e+00 : f32
    %15 = vector.broadcast %cst_2 : f32 to vector<18x128xf32>
    %16 = arith.addf %15, %14 : vector<18x128xf32>
    %c1_i32_3 = arith.constant 1 : i32
    %17 = vector.broadcast %c1_i32_3 : i32 to vector<18x128xi32>
    %18 = arith.subi %2, %17 : vector<18x128xi32>
    %19 = arith.sitofp %18 : vector<18x128xi32> to vector<18x128xf32>
    %cst_4 = arith.constant 0.13333334 : f32
    %20 = vector.broadcast %cst_4 : f32 to vector<18x128xf32>
    %21 = arith.mulf %19, %20 : vector<18x128xf32>
    %cst_5 = arith.constant -1.000000e+00 : f32
    %22 = vector.broadcast %cst_5 : f32 to vector<18x128xf32>
    %23 = arith.addf %22, %21 : vector<18x128xf32>
    %c4_i32 = arith.constant 4 : i32
    %24 = vector.broadcast %c4_i32 : i32 to vector<18x128xi32>
    %25 = arith.cmpi eq, %4, %24 : vector<18x128xi32>
    %c5_i32 = arith.constant 5 : i32
    %26 = vector.broadcast %c5_i32 : i32 to vector<18x128xi32>
    %27 = arith.cmpi eq, %4, %26 : vector<18x128xi32>
    %cst_6 = arith.constant 0.000000e+00 : f32
    %28 = vector.broadcast %cst_6 : f32 to vector<18x128xf32>
    %29 = arith.select %27, %23, %28 : vector<18x128xi1>, vector<18x128xf32>
    %30 = arith.select %25, %16, %29 : vector<18x128xi1>, vector<18x128xf32>
    %cst_7 = arith.constant 0.000000e+00 : f32
    %31 = vector.broadcast %cst_7 : f32 to vector<18x128xf32>
    %32 = arith.select %11, %30, %31 : vector<18x128xi1>, vector<18x128xf32>
    %33 = vector.shape_cast %32 : vector<18x128xf32> to vector<1x18x128xf32>
    %34 = vector.broadcast %33 : vector<1x18x128xf32> to vector<2x18x128xf32>
    %35 = arith.addf %0, %34 : vector<2x18x128xf32>
    %36 = vector.extract_strided_slice %35 {offsets = [0, 0, 0], sizes = [2, 16, 128], strides = [1, 1, 1]} : vector<2x18x128xf32> to vector<2x16x128xf32>
    %37 = vector.shape_cast %36 : vector<2x16x128xf32> to vector<32x128xf32>
    %c0_8 = arith.constant 0 : index
    %c0_9 = arith.constant 0 : index
    %38 = vector.load %arg2[%c0_8, %c0_9] : memref<384x128xf32, #tpu.memory_space<vmem>>, vector<128x128xf32>
    %cst_10 = arith.constant dense<0.000000e+00> : vector<32x128xf32>
    %39 = tpu.matmul %37, %38, %cst_10 {dimension_numbers = #tpu.dot_dimension_numbers<[1], [0], [0], [1], [0, 0, 1, 1], [], []>} : vector<32x128xf32>, vector<128x128xf32>, vector<32x128xf32> -> vector<32x128xf32>
    %40 = vector.extract_strided_slice %35 {offsets = [0, 1, 0], sizes = [2, 16, 128], strides = [1, 1, 1]} : vector<2x18x128xf32> to vector<2x16x128xf32>
    %41 = vector.shape_cast %40 : vector<2x16x128xf32> to vector<32x128xf32>
    %c128 = arith.constant 128 : index
    %c0_11 = arith.constant 0 : index
    %42 = vector.load %arg2[%c128, %c0_11] : memref<384x128xf32, #tpu.memory_space<vmem>>, vector<128x128xf32>
    %cst_12 = arith.constant dense<0.000000e+00> : vector<32x128xf32>
    %43 = tpu.matmul %41, %42, %cst_12 {dimension_numbers = #tpu.dot_dimension_numbers<[1], [0], [0], [1], [0, 0, 1, 1], [], []>} : vector<32x128xf32>, vector<128x128xf32>, vector<32x128xf32> -> vector<32x128xf32>
    %44 = arith.addf %39, %43 : vector<32x128xf32>
    %45 = vector.extract_strided_slice %35 {offsets = [0, 2, 0], sizes = [2, 16, 128], strides = [1, 1, 1]} : vector<2x18x128xf32> to vector<2x16x128xf32>
    %46 = vector.shape_cast %45 : vector<2x16x128xf32> to vector<32x128xf32>
    %c256 = arith.constant 256 : index
    %c0_13 = arith.constant 0 : index
    %47 = vector.load %arg2[%c256, %c0_13] : memref<384x128xf32, #tpu.memory_space<vmem>>, vector<128x128xf32>
    %cst_14 = arith.constant dense<0.000000e+00> : vector<32x128xf32>
    %48 = tpu.matmul %46, %47, %cst_14 {dimension_numbers = #tpu.dot_dimension_numbers<[1], [0], [0], [1], [0, 0, 1, 1], [], []>} : vector<32x128xf32>, vector<128x128xf32>, vector<32x128xf32> -> vector<32x128xf32>
    %49 = arith.addf %44, %48 : vector<32x128xf32>
    %c0_15 = arith.constant 0 : index
    %c0_16 = arith.constant 0 : index
    %50 = vector.load %arg3[%c0_15, %c0_16] : memref<1x128xf32, #tpu.memory_space<vmem>>, vector<1x128xf32>
    %51 = vector.broadcast %50 : vector<1x128xf32> to vector<32x128xf32>
    %52 = arith.addf %49, %51 : vector<32x128xf32>
    %53 = vector.shape_cast %52 : vector<32x128xf32> to vector<2x16x128xf32>
    %c0_17 = arith.constant 0 : index
    %c0_18 = arith.constant 0 : index
    %c0_19 = arith.constant 0 : index
    %54 = vector.load %arg4[%c0_17, %c0_18, %c0_19] : memref<2x16x128xf32, #tpu.memory_space<vmem>>, vector<2x16x128xf32>
    tpu.vector_store %arg4[%c0_17, %c0_18, %c0_19], %53 {strides = array<i32>} : memref<2x16x128xf32, #tpu.memory_space<vmem>>, vector<2x16x128xf32>,
    return
  }
  func.func @transform_0(%arg0: i32) -> (i32, i32, i32) {
    %c0_i32 = arith.constant 0 : i32
    %c0_i32_0 = arith.constant 0 : i32
    %c0_i32_1 = arith.constant 0 : i32
    %c0_i32_2 = arith.constant 0 : i32
    return %c0_i32, %c0_i32_0, %c0_i32_1 : i32, i32, i32
  }
  func.func @transform_1(%arg0: i32) -> (i32, i32) {
    %c0_i32 = arith.constant 0 : i32
    %c0_i32_0 = arith.constant 0 : i32
    %c0_i32_1 = arith.constant 0 : i32
    return %c0_i32, %c0_i32_0 : i32, i32
  }
  func.func @transform_2(%arg0: i32) -> (i32, i32) {
    %c0_i32 = arith.constant 0 : i32
    %c0_i32_0 = arith.constant 0 : i32
    %c0_i32_1 = arith.constant 0 : i32
    return %c0_i32, %c0_i32_0 : i32, i32
  }
  func.func @transform_3(%arg0: i32) -> (i32, i32, i32) {
    %c0_i32 = arith.constant 0 : i32
    %c0_i32_0 = arith.constant 0 : i32
    %c0_i32_1 = arith.constant 0 : i32
    %c0_i32_2 = arith.constant 0 : i32
    return %c0_i32, %c0_i32_0, %c0_i32_1 : i32, i32, i32
  }
}

</mosaic_0001>

<llo_original>
// kernel: tile.8
$region0: #{tile.8}
  #allocation0 [shape = 's32[1]{0}', space=sflag, size = 0x4, scoped, tag = 'scoped memory for tile.8']
  %s0 = inlined_call_operand.vmem [shape: f32[8], index: 0, kind: input, shape index: {}]
  %s1 = inlined_call_operand.vmem [shape: f32[16,8], index: 1, kind: output, shape index: {}]
  // Predicated region
  $region2: #{tile.8} parent=0 // pred_check
    _
  $region3: #{tile.8} parent=0 // pred_check_branch
    %3 = sbr.rel (0) target = $region5
  $region4: #{tile.8} parent=0 // pred_region
    _
  $region5: #{tile.8} parent=0 // pred_fallthru
    _
  %v4 = vld [vmem:[%s0] ss:$0 sm:$0xff]
  %5 = vst [vmem:[%s1] sm:$0xff] %v4
  %s6 = scalar_lea.vmem %s1, 8
  %7 = vst [vmem:[%s6] sm:$0xff] %v4

// kernel: tile.9
$region0: #{tile.9}
  %s0 = inlined_call_operand.vmem [shape: f32[16,8], index: 0, kind: input, shape index: {}]
  %s1 = inlined_call_operand.vmem [shape: f32[1,128], index: 1, kind: output, shape index: {}]
  $region1: #{tile.9} parent=0
    #allocation0 [shape = 'u8[4096]{0}', space=vmem, size = 0x1000, scoped, tag = 'scoped mem for output reshape']
    %v2 = vld [vmem:[%s0] sm:$0x1]
    %vm3 = vcmask 64512
    %4 = vst.msk [vmem:[#allocation0] sm:$0x1] %vm3, %v2
    %s5 = scalar_lea.vmem %s0, 15
    %v6 = vld [vmem:[%s5] sm:$0x1]
    %7 = vrot.lane.b32.xlu0 %v6, 120
    %v8 = vpop.permute.xlu0 %7
    %vm9 = vcmask 1048512
    %10 = vst.msk [vmem:[#allocation0] sm:$0x1] %vm9, %v8
    %s11 = scalar_lea.vmem %s0, 14
    %v12 = vld [vmem:[%s11] sm:$0x1]
    %13 = vrot.lane.b32.xlu0 %v12, 112
    %v14 = vpop.permute.xlu0 %13
    %vm15 = vcmask 982912
    %16 = vst.msk [vmem:[#allocation0] sm:$0x1] %vm15, %v14
    %s17 = scalar_lea.vmem %s0, 13
    %v18 = vld [vmem:[%s17] sm:$0x1]
    %19 = vrot.lane.b32.xlu0 %v18, 104
    %v20 = vpop.permute.xlu0 %19
    %vm21 = vcmask 917312
    %22 = vst.msk [vmem:[#allocation0] sm:$0x1] %vm21, %v20
    %s23 = scalar_lea.vmem %s0, 12
    %v24 = vld [vmem:[%s23] sm:$0x1]
    %25 = vrot.lane.b32.xlu0 %v24, 96
    %v26 = vpop.permute.xlu0 %25
    %vm27 = vcmask 851712
    %28 = vst.msk [vmem:[#allocation0] sm:$0x1] %vm27, %v26
    %s29 = scalar_lea.vmem %s0, 11
    %v30 = vld [vmem:[%s29] sm:$0x1]
    %31 = vrot.lane.b32.xlu0 %v30, 88
    %v32 = vpop.permute.xlu0 %31
    %vm33 = vcmask 786112
    %34 = vst.msk [vmem:[#allocation0] sm:$0x1] %vm33, %v32
    %s35 = scalar_lea.vmem %s0, 10
    %v36 = vld [vmem:[%s35] sm:$0x1]
    %37 = vrot.lane.b32.xlu0 %v36, 80
    %v38 = vpop.permute.xlu0 %37
    %vm39 = vcmask 720512
    %40 = vst.msk [vmem:[#allocation0] sm:$0x1] %vm39, %v38
    %s41 = scalar_lea.vmem %s0, 9
    %v42 = vld [vmem:[%s41] sm:$0x1]
    %43 = vrot.lane.b32.xlu0 %v42, 72
    %v44 = vpop.permute.xlu0 %43
    %vm45 = vcmask 654912
    %46 = vst.msk [vmem:[#allocation0] sm:$0x1] %vm45, %v44
    %s47 = scalar_lea.vmem %s0, 8
    %v48 = vld [vmem:[%s47] sm:$0x1]
    %49 = vrot.lane.b32.xlu0 %v48, 64
    %v50 = vpop.permute.xlu0 %49
    %vm51 = vcmask 589312
    %52 = vst.msk [vmem:[#allocation0] sm:$0x1] %vm51, %v50
    %s53 = scalar_lea.vmem %s0, 7
    %v54 = vld [vmem:[%s53] sm:$0x1]
    %55 = vrot.lane.b32.xlu0 %v54, 56
    %v56 = vpop.permute.xlu0 %55
    %vm57 = vcmask 523712
    %58 = vst.msk [vmem:[#allocation0] sm:$0x1] %vm57, %v56
    %s59 = scalar_lea.vmem %s0, 6
    %v60 = vld [vmem:[%s59] sm:$0x1]
    %61 = vrot.lane.b32.xlu0 %v60, 48
    %v62 = vpop.permute.xlu0 %61
    %vm63 = vcmask 458112
    %64 = vst.msk [vmem:[#allocation0] sm:$0x1] %vm63, %v62
    %s65 = scalar_lea.vmem %s0, 5
    %v66 = vld [vmem:[%s65] sm:$0x1]
    %67 = vrot.lane.b32.xlu0 %v66, 40
    %v68 = vpop.permute.xlu0 %67
    %vm69 = vcmask 392512
    %70 = vst.msk [vmem:[#allocation0] sm:$0x1] %vm69, %v68
    %s71 = scalar_lea.vmem %s0, 4
    %v72 = vld [vmem:[%s71] sm:$0x1]
    %73 = vrot.lane.b32.xlu0 %v72, 32
    %v74 = vpop.permute.xlu0 %73
    %vm75 = vcmask 326912
    %76 = vst.msk [vmem:[#allocation0] sm:$0x1] %vm75, %v74
    %s77 = scalar_lea.vmem %s0, 3
    %v78 = vld [vmem:[%s77] sm:$0x1]
    %79 = vrot.lane.b32.xlu0 %v78, 24
    %v80 = vpop.permute.xlu0 %79
    %vm81 = vcmask 261312
    %82 = vst.msk [vmem:[#allocation0] sm:$0x1] %vm81, %v80
    %s83 = scalar_lea.vmem %s0, 2
    %v84 = vld [vmem:[%s83] sm:$0x1]
    %85 = vrot.lane.b32.xlu0 %v84, 16
    %v86 = vpop.permute.xlu0 %85
    %vm87 = vcmask 195712
    %88 = vst.msk [vmem:[#allocation0] sm:$0x1] %vm87, %v86
    %s89 = scalar_lea.vmem %s0, 1
    %v90 = vld [vmem:[%s89] sm:$0x1]
    %91 = vrot.lane.b32.xlu0 %v90, 8
    %v92 = vpop.permute.xlu0 %91
    %vm93 = vcmask 130112
    %94 = vst.msk [vmem:[#allocation0] sm:$0x1] %vm93, %v92
    %s96 = ssub.s32 2, 1
    %v97 = vld [vmem:[#allocation0] sm:%s96]
    %s99 = ssub.s32 2, 1
    %100 = vst [vmem:[%s1] sm:%s99] %v97

// kernel: _coord_conv2d_impl.1
$region0: #{_coord_conv2d_impl.1}
  #allocation0 [shape = 'u32[]', space=smem, size = 0x4, offset = 0x4, fixed_abs, tag = 'smem constant byte address 0x4 - core index']
  #allocation1 [shape = 'u32[72,128]{1,0:T(1,128)}', space=vmem, size = 0x9000, scoped, tag = 'internal scratch']
  %s0 = inlined_call_operand.vmem [shape: f32[2,18,128], index: 0, kind: input, shape index: {}]
  %s1 = inlined_call_operand.vmem [shape: f32[384,128], index: 1, kind: input, shape index: {}]
  %s2 = inlined_call_operand.vmem [shape: f32[1,128], index: 2, kind: input, shape index: {}]
  %s3 = inlined_call_operand.vmem [shape: f32[2,16,128], index: 3, kind: output, shape index: {}]
  %s4 = sld [smem:[#allocation0]]
  $region22: #{_coord_conv2d_impl.1} parent=0
    _
  %s6 = ssub.s32 1, %s4
  %s7 = scalar_select 0, %s6, %s4
  // Predicated region
  $region2: #{_coord_conv2d_impl.1} parent=0 // pred_check
    _
  $region3: #{_coord_conv2d_impl.1} parent=0 // pred_check_branch
    %9 = sbr.rel (0) target = $region5
  $region4: #{_coord_conv2d_impl.1} parent=0 // pred_region
    _
  $region5: #{_coord_conv2d_impl.1} parent=0 // pred_fallthru
    _
  // Predicated region
  $region6: #{_coord_conv2d_impl.1} parent=0 // pred_check
    _
  $region7: #{_coord_conv2d_impl.1} parent=0 // pred_check_branch
    %11 = sbr.rel (0) target = $region9
  $region8: #{_coord_conv2d_impl.1} parent=0 // pred_region
    _
  $region9: #{_coord_conv2d_impl.1} parent=0 // pred_fallthru
    _
  // Predicated region
  $region10: #{_coord_conv2d_impl.1} parent=0 // pred_check
    _
  $region11: #{_coord_conv2d_impl.1} parent=0 // pred_check_branch
    %13 = sbr.rel (0) target = $region13
  $region12: #{_coord_conv2d_impl.1} parent=0 // pred_region
    _
  $region13: #{_coord_conv2d_impl.1} parent=0 // pred_fallthru
    _
  %v14 = vld [vmem:[%s0] sm:$0xff]
  %v15 = vld [vmem:[%s0 + $0x8] sm:$0xff]
  %v16 = vld [vmem:[%s0 + $0x10] sm:$0x3]
  %v17 = vld [vmem:[%s0 + $0x18] sm:$0xff]
  %v18 = vld [vmem:[%s0 + $0x20] sm:$0xff]
  %v19 = vld [vmem:[%s0 + $0x28] sm:$0x3]
  %v20 = vlaneseq
  %v21 = vand.u32 %v20, 127
  %v22 = vlaneseq
  %v23 = vshrl.u32 %v22, 7
  %v24 = vadd.s32 %v23, 8
  %v25 = vadd.s32 %v23, 16
  %v26 = vand.u32 %v21, 7
  %v27 = vshra.s32 %v21, 3
  %vm28 = vcmp.ge.s32.totalorder %v23, 1
  %vm29 = vcmp.ge.s32.totalorder %v24, 1
  %vm30 = vcmp.ge.s32.totalorder %v25, 1
  %vm31 = vcmp.lt.s32.totalorder %v23, 17
  %vm32 = vcmp.lt.s32.totalorder %v24, 17
  %vm33 = vcmp.lt.s32.totalorder %v25, 17
  %vm34 = vmand %vm28, %vm31
  %vm35 = vmand %vm29, %vm32
  %vm36 = vmand %vm30, %vm33
  %v37 = vcvt.s32.f32 %v27
  %v38 = vmul.f32 %v37, 0.13333334
  %v39 = vadd.f32 %v38, -1.0
  %v40 = vsub.s32 %v23, 1
  %v41 = vsub.s32 %v24, 1
  %v42 = vsub.s32 %v25, 1
  %v43 = vcvt.s32.f32 %v40
  %v44 = vcvt.s32.f32 %v41
  %v45 = vcvt.s32.f32 %v42
  %v46 = vmul.f32 %v43, 0.13333334
  %v47 = vmul.f32 %v44, 0.13333334
  %v48 = vmul.f32 %v45, 0.13333334
  %v49 = vadd.f32 %v46, -1.0
  %v50 = vadd.f32 %v47, -1.0
  %v51 = vadd.f32 %v48, -1.0
  %vm52 = vcmp.eq.s32.totalorder %v26, 4
  %vm53 = vcmp.eq.s32.totalorder %v26, 5
  %v54 = vsel %vm53, %v49, 0.0
  %v55 = vsel %vm53, %v50, 0.0
  %v56 = vsel %vm53, %v51, 0.0
  %v57 = vsel %vm52, %v39, %v54
  %v58 = vsel %vm52, %v39, %v55
  %v59 = vsel %vm52, %v39, %v56
  %v60 = vsel %vm34, %v57, 0.0
  %v61 = vsel %vm35, %v58, 0.0
  %v62 = vsel %vm36, %v59, 0.0
  %v63 = vadd.f32 %v14, %v60
  %v64 = vadd.f32 %v15, %v61
  %v65 = vadd.f32 %v16, %v62
  %v66 = vadd.f32 %v17, %v60
  %v67 = vadd.f32 %v18, %v61
  %v68 = vadd.f32 %v19, %v62
  %v69 = vld [vmem:[%s1] sm:$0xff]
  %v70 = vld [vmem:[%s1 + $0x8] sm:$0xff]
  %v71 = vld [vmem:[%s1 + $0x10] sm:$0xff]
  %v72 = vld [vmem:[%s1 + $0x18] sm:$0xff]
  %v73 = vld [vmem:[%s1 + $0x20] sm:$0xff]
  %v74 = vld [vmem:[%s1 + $0x28] sm:$0xff]
  %v75 = vld [vmem:[%s1 + $0x30] sm:$0xff]
  %v76 = vld [vmem:[%s1 + $0x38] sm:$0xff]
  %v77 = vld [vmem:[%s1 + $0x40] sm:$0xff]
  %v78 = vld [vmem:[%s1 + $0x48] sm:$0xff]
  %v79 = vld [vmem:[%s1 + $0x50] sm:$0xff]
  %v80 = vld [vmem:[%s1 + $0x58] sm:$0xff]
  %v81 = vld [vmem:[%s1 + $0x60] sm:$0xff]
  %v82 = vld [vmem:[%s1 + $0x68] sm:$0xff]
  %v83 = vld [vmem:[%s1 + $0x70] sm:$0xff]
  %v84 = vld [vmem:[%s1 + $0x78] sm:$0xff]
  %vm91 = vcmask 1046528
  %v92 = vrot.slane %v63, 1
  %v93 = vrot.slane %v64, 1
  %v94 = vsel %vm91, %v92, %v93
  %v95 = vrot.slane %v65, 1
  %v96 = vsel %vm91, %v93, %v95
  %v97 = vrot.slane %v66, 1
  %v98 = vrot.slane %v67, 1
  %v99 = vsel %vm91, %v97, %v98
  %v100 = vrot.slane %v68, 1
  %v101 = vsel %vm91, %v98, %v100
  %v106 = vld [vmem:[%s1 + $0x80] sm:$0xff]
  %v107 = vld [vmem:[%s1 + $0x88] sm:$0xff]
  %v108 = vld [vmem:[%s1 + $0x90] sm:$0xff]
  %v109 = vld [vmem:[%s1 + $0x98] sm:$0xff]
  %v110 = vld [vmem:[%s1 + $0xa0] sm:$0xff]
  %v111 = vld [vmem:[%s1 + $0xa8] sm:$0xff]
  %v112 = vld [vmem:[%s1 + $0xb0] sm:$0xff]
  %v113 = vld [vmem:[%s1 + $0xb8] sm:$0xff]
  %v114 = vld [vmem:[%s1 + $0xc0] sm:$0xff]
  %v115 = vld [vmem:[%s1 + $0xc8] sm:$0xff]
  %v116 = vld [vmem:[%s1 + $0xd0] sm:$0xff]
  %v117 = vld [vmem:[%s1 + $0xd8] sm:$0xff]
  %v118 = vld [vmem:[%s1 + $0xe0] sm:$0xff]
  %v119 = vld [vmem:[%s1 + $0xe8] sm:$0xff]
  %v120 = vld [vmem:[%s1 + $0xf0] sm:$0xff]
  %v121 = vld [vmem:[%s1 + $0xf8] sm:$0xff]
  %122 = vmatpush.msra.mxu0 %v121
  %123 = vmatpush.msra.mxu0 %v120
  %124 = vmatpush.msra.mxu0 %v119
  %125 = vmatpush.msra.mxu0 %v118
  %126 = vmatpush.msra.mxu0 %v117
  %127 = vmatpush.msra.mxu0 %v116
  %128 = vmatpush.msra.mxu0 %v115
  %129 = vmatpush.msra.mxu0 %v114
  %130 = vmatpush.msra.mxu0 %v113
  %131 = vmatpush.msra.mxu0 %v112
  %132 = vmatpush.msra.mxu0 %v111
  %133 = vmatpush.msra.mxu0 %v110
  %134 = vmatpush.msra.mxu0 %v109
  %135 = vmatpush.msra.mxu0 %v108
  %136 = vmatpush.msra.mxu0 %v107
  %137 = vmatpush.msra.mxu0 %v106
  %138 = vmatmul.f32.gmra.mxu0 %v94
  %v139 = vpop.f32.mrf.mxu0
  %v140 = vadd.f32 0.0, %v139
  %141 = vmatmul.f32.gmra.mxu0 %v96
  %v142 = vpop.f32.mrf.mxu0
  %v143 = vadd.f32 0.0, %v142
  %144 = vmatmul.f32.gmra.mxu0 %v99
  %v145 = vpop.f32.mrf.mxu0
  %v146 = vadd.f32 0.0, %v145
  %147 = vmatmul.f32.gmra.mxu0 %v101
  %v148 = vpop.f32.mrf.mxu0
  %v149 = vadd.f32 0.0, %v148
  %150 = vdwg.mxu0
  %151 = vmatpush.msra.mxu0 %v84
  %152 = vmatpush.msra.mxu0 %v83
  %153 = vmatpush.msra.mxu0 %v82
  %154 = vmatpush.msra.mxu0 %v81
  %155 = vmatpush.msra.mxu0 %v80
  %156 = vmatpush.msra.mxu0 %v79
  %157 = vmatpush.msra.mxu0 %v78
  %158 = vmatpush.msra.mxu0 %v77
  %159 = vmatpush.msra.mxu0 %v76
  %160 = vmatpush.msra.mxu0 %v75
  %161 = vmatpush.msra.mxu0 %v74
  %162 = vmatpush.msra.mxu0 %v73
  %163 = vmatpush.msra.mxu0 %v72
  %164 = vmatpush.msra.mxu0 %v71
  %165 = vmatpush.msra.mxu0 %v70
  %166 = vmatpush.msra.mxu0 %v69
  %167 = vmatmul.f32.gmra.mxu0 %v63
  %v168 = vpop.f32.mrf.mxu0
  %v169 = vadd.f32 %v140, %v168
  %170 = vmatmul.f32.gmra.mxu0 %v64
  %v171 = vpop.f32.mrf.mxu0
  %v172 = vadd.f32 %v143, %v171
  %173 = vmatmul.f32.gmra.mxu0 %v66
  %v174 = vpop.f32.mrf.mxu0
  %v175 = vadd.f32 %v146, %v174
  %176 = vmatmul.f32.gmra.mxu0 %v67
  %v177 = vpop.f32.mrf.mxu0
  %v178 = vadd.f32 %v149, %v177
  %179 = vdwg.mxu0
  %vm180 = vcmask 1045504
  %v181 = vrot.slane %v63, 2
  %v182 = vrot.slane %v64, 2
  %v183 = vsel %vm180, %v181, %v182
  %v184 = vrot.slane %v65, 2
  %v185 = vsel %vm180, %v182, %v184
  %v186 = vrot.slane %v66, 2
  %v187 = vrot.slane %v67, 2
  %v188 = vsel %vm180, %v186, %v187
  %v189 = vrot.slane %v68, 2
  %v190 = vsel %vm180, %v187, %v189
  %v195 = vld [vmem:[%s1 + $0x100] sm:$0xff]
  %v196 = vld [vmem:[%s1 + $0x108] sm:$0xff]
  %v197 = vld [vmem:[%s1 + $0x110] sm:$0xff]
  %v198 = vld [vmem:[%s1 + $0x118] sm:$0xff]
  %v199 = vld [vmem:[%s1 + $0x120] sm:$0xff]
  %v200 = vld [vmem:[%s1 + $0x128] sm:$0xff]
  %v201 = vld [vmem:[%s1 + $0x130] sm:$0xff]
  %v202 = vld [vmem:[%s1 + $0x138] sm:$0xff]
  %v203 = vld [vmem:[%s1 + $0x140] sm:$0xff]
  %v204 = vld [vmem:[%s1 + $0x148] sm:$0xff]
  %v205 = vld [vmem:[%s1 + $0x150] sm:$0xff]
  %v206 = vld [vmem:[%s1 + $0x158] sm:$0xff]
  %v207 = vld [vmem:[%s1 + $0x160] sm:$0xff]
  %v208 = vld [vmem:[%s1 + $0x168] sm:$0xff]
  %v209 = vld [vmem:[%s1 + $0x170] sm:$0xff]
  %v210 = vld [vmem:[%s1 + $0x178] sm:$0xff]
  %211 = vmatpush.msra.mxu0 %v210
  %212 = vmatpush.msra.mxu0 %v209
  %213 = vmatpush.msra.mxu0 %v208
  %214 = vmatpush.msra.mxu0 %v207
  %215 = vmatpush.msra.mxu0 %v206
  %216 = vmatpush.msra.mxu0 %v205
  %217 = vmatpush.msra.mxu0 %v204
  %218 = vmatpush.msra.mxu0 %v203
  %219 = vmatpush.msra.mxu0 %v202
  %220 = vmatpush.msra.mxu0 %v201
  %221 = vmatpush.msra.mxu0 %v200
  %222 = vmatpush.msra.mxu0 %v199
  %223 = vmatpush.msra.mxu0 %v198
  %224 = vmatpush.msra.mxu0 %v197
  %225 = vmatpush.msra.mxu0 %v196
  %226 = vmatpush.msra.mxu0 %v195
  %227 = vmatmul.f32.gmra.mxu0 %v183
  %v228 = vpop.f32.mrf.mxu0
  %v229 = vadd.f32 0.0, %v228
  %230 = vmatmul.f32.gmra.mxu0 %v185
  %v231 = vpop.f32.mrf.mxu0
  %v232 = vadd.f32 0.0, %v231
  %233 = vmatmul.f32.gmra.mxu0 %v188
  %v234 = vpop.f32.mrf.mxu0
  %v235 = vadd.f32 0.0, %v234
  %236 = vmatmul.f32.gmra.mxu0 %v190
  %v237 = vpop.f32.mrf.mxu0
  %v238 = vadd.f32 0.0, %v237
  %239 = vdwg.mxu0
  %v240 = vadd.f32 %v169, %v229
  %v241 = vadd.f32 %v172, %v232
  %v242 = vadd.f32 %v175, %v235
  %v243 = vadd.f32 %v178, %v238
  %v244 = vld [vmem:[%s2] sm:$0x1]
  %v246 = vperm.slane %v244, 0
  %v248 = vadd.f32 %v240, %v246
  %v249 = vadd.f32 %v241, %v246
  %v250 = vadd.f32 %v242, %v246
  %v251 = vadd.f32 %v243, %v246
  %252 = vst [vmem:[%s3] sm:$0xff] %v248
  %253 = vst [vmem:[%s3 + $0x8] sm:$0xff] %v249
  %254 = vst [vmem:[%s3 + $0x10] sm:$0xff] %v250
  %255 = vst [vmem:[%s3 + $0x18] sm:$0xff] %v251
  // Predicated region
  $region14: #{_coord_conv2d_impl.1} parent=0 // pred_check
    _
  $region15: #{_coord_conv2d_impl.1} parent=0 // pred_check_branch
    %257 = sbr.rel (0) target = $region17
  $region16: #{_coord_conv2d_impl.1} parent=0 // pred_region
    _
  $region17: #{_coord_conv2d_impl.1} parent=0 // pred_fallthru
    _
  // Predicated region
  $region18: #{_coord_conv2d_impl.1} parent=0 // pred_check
    _
  $region19: #{_coord_conv2d_impl.1} parent=0 // pred_check_branch
    %259 = sbr.rel (0) target = $region21
  $region20: #{_coord_conv2d_impl.1} parent=0 // pred_region
    _
  $region21: #{_coord_conv2d_impl.1} parent=0 // pred_fallthru
    _

</llo_original>
